<compile_context>
chip_gen: v7x
topology: tpu7x:2x2x1
jax: 0.10.0
libtpu: 0.0.40
codegen_flags: <defaults>
</compile_context>

<pallas_src>
import jax
import jax.numpy as jnp
from jax.experimental import pallas as pl
from jax.experimental.pallas import tpu as pltpu


def _identity_dma_kernel(d_ref, o_ref, sem):
    # Single HBM -> HBM DMA of the whole parameter. No VMEM staging, no
    # compute, no per-tile overhead.
    cp = pltpu.make_async_copy(d_ref, o_ref, sem)
    cp.start()
    cp.wait()


def ppcef2_forward(d):
    """Pallas implementation of PPCEF_2.forward(): returns `d`.

    Implemented as one whole-array HBM->HBM async DMA (memory_space=pl.ANY on
    both sides), which is the cheapest way to materialize a fresh output
    buffer holding `d`'s contents on TPU.
    """
    if d.size == 0:
        return d
    return pl.pallas_call(
        _identity_dma_kernel,
        out_shape=jax.ShapeDtypeStruct(d.shape, d.dtype),
        in_specs=[pl.BlockSpec(memory_space=pl.ANY)],
        out_specs=pl.BlockSpec(memory_space=pl.ANY),
        scratch_shapes=[pltpu.SemaphoreType.DMA(())],
    )(d)


class PPCEF2:
    """JAX/Pallas port of the PyTorch PPCEF_2 module."""

    def __init__(self, N, D, K):
        assert K == N, "Assumption of the method!"
        assert N >= 1
        assert D >= 1
        self.N = N
        self.D = D
        self.K = K
        # Deterministic init matching torch.nn.Parameter(torch.zeros((N, D))).
        self.d = jnp.zeros((N, D), dtype=jnp.float32)

    def forward(self):
        # NOTE: in production the fastest forward is simply `return self.d`
        # (zero-cost identity).  The Pallas path below exists to exercise a
        # real TPU kernel while staying as close to zero-cost as possible.
        return ppcef2_forward(self.d)

    def get_matrices(self):
        return (
            jnp.ones((self.N, 1), dtype=jnp.float32),
            jnp.ones((self.N, self.K), dtype=jnp.float32),
            self.d,
        )

    def loss(self, *args, **kwargs):
        return jnp.array([0.0], dtype=jnp.float32)


if __name__ == "__main__":
    # Small shapes consistent with the module: N = K = 8, D = 32.
    N, D, K = 8, 32, 8

    mod = PPCEF2(N, D, K)

    # 1) Forward with the module's own (zero-initialized) parameter.
    out_zero = jax.block_until_ready(mod.forward())
    assert out_zero.shape == (N, D)
    assert out_zero.dtype == jnp.float32
    assert bool(jnp.all(out_zero == 0.0))

    # 2) Sanity-check the kernel passthrough with a non-trivial parameter
    #    value (as it would look mid-optimization), built deterministically.
    key = jax.random.PRNGKey(0)
    d_rand = jax.random.normal(key, (N, D), dtype=jnp.float32)
    mod.d = d_rand
    out_rand = jax.block_until_ready(mod.forward())
    assert out_rand.shape == (N, D)
    assert bool(jnp.allclose(out_rand, d_rand))

    # 3) Exercise a second (still small) shape to confirm the grid-less DMA
    #    path is shape-agnostic.
    key2 = jax.random.PRNGKey(1)
    d2 = jax.random.normal(key2, (64, 128), dtype=jnp.float32)
    out2 = jax.block_until_ready(ppcef2_forward(d2))
    assert out2.shape == (64, 128)
    assert bool(jnp.allclose(out2, d2))

    print("KERNEL_OK")
</pallas_src>

<mosaic_0001>
module attributes {stable_mosaic.version = 11 : i64} {
  func.func @_identity_dma_kernel(%arg0: memref<8x32xf32, #tpu.memory_space<any>>, %arg1: memref<8x32xf32, #tpu.memory_space<any>>, %arg2: memref<!tpu.dma_semaphore, #tpu.memory_space<semaphore_mem>>) attributes {dimension_semantics = [], scalar_prefetch = 0 : i64, scratch_operands = 1 : i64, tpu.core_type = #tpu.core_type<tc>} {
    tpu.enqueue_dma source(%arg0 : memref<8x32xf32, #tpu.memory_space<any>>) target(%arg1 : memref<8x32xf32, #tpu.memory_space<any>>) target_semaphore(%arg2 : memref<!tpu.dma_semaphore, #tpu.memory_space<semaphore_mem>>)
    tpu.wait_dma2 semaphore(%arg2 : memref<!tpu.dma_semaphore, #tpu.memory_space<semaphore_mem>>) src(%arg0 : memref<8x32xf32, #tpu.memory_space<any>>) dst(%arg1 : memref<8x32xf32, #tpu.memory_space<any>>)
    return
  }
}

</mosaic_0001>

<llo_original>
// kernel: tpu_custom_call.1
$region0: #{tpu_custom_call.1}
  #allocation0 [shape = 'u32[]', space=smem, size = 0x4, offset = 0x4, fixed_abs, tag = 'smem constant byte address 0x4 - core index']
  #allocation1 [shape = 'u32[144,128]{1,0:T(1,128)}', space=vmem, size = 0x12000, scoped, tag = 'internal scratch']
  #allocation2 [shape = 's32[1]{0}', space=sflag, size = 0x4, scoped, tag = 'scratch operand']
  #allocation3 [shape = 's32[]', space=sflag, size = 0x4, offset = 0, fixed_abs, tag = 'sflag constant byte address 0x0 - dummy sync flag']
  #allocation4 [shape = 'u32[0]{0}', space=smem, size = 0, offset = 0, fixed_abs, tag = 'smem constant byte address 0x0 - null']
  %s0 = inlined_call_operand.hbm [shape: f32[8,32], index: 0, kind: input, shape index: {}]
  %s1 = inlined_call_operand.hbm [shape: f32[8,32], index: 1, kind: output, shape index: {}]
  %s2 = sld [smem:[#allocation0]]
  $region2: #{tpu_custom_call.1} parent=0
    _
  %s4 = ssub.s32 1, %s2
  %s5 = scalar_select 0, %s4, %s2
  %s7 = sshll.u32 1, 14
  %s8 = sxor.u32 4294967295, %s7
  %s11 = sshll.u32 3, 24
  %s12 = sxor.u32 4294967295, %s11
  %s13 = sand.u32 0, %s12
  %s15 = sor.u32 %s13, 0
  %18 = dma.general %s0, 128, %s1, [#allocation2], [#allocation3], [#allocation4], %s15, 0
  %s19 = smul.u32 8, 1
  %s20 = sshll.u32 %s19, 4
  %21 = dma.done [#allocation2], %s20
  %22 = vsyncmov [#allocation2]
  %s23 = vpop.sfrf %22
  %p24 = scmp.eq.s32.totalorder %s23, 0
  %p25 = pneg %p24
  %27 = shalt.err (%p25)

</llo_original>
